<compile_context>
chip_gen: v7x
topology: tpu7x:2x2x1
jax: 0.10.0
libtpu: 0.0.40
codegen_flags: <defaults>
</compile_context>

<pallas_src>
import functools

import jax
import jax.numpy as jnp
from jax.experimental import pallas as pl
from jax.experimental.pallas import tpu as pltpu


# ----------------------------------------------------------------------------
# helpers
# ----------------------------------------------------------------------------
def _round_up(x, m):
    return (x + m - 1) // m * m


def _pick_tile_m(M, tm_max=512):
    """Large M tiles amortize the ~0.35us/step overhead; keep >=2 grid steps
    when possible so a 'parallel' M axis can shard across v7x's 2 TensorCores."""
    half = _round_up(max(pl.cdiv(M, 2), 128), 128)
    return min(tm_max, half)


def bn_fold(conv_bias, gamma, beta, mean, var, eps=1e-5):
    """Fold conv bias + eval-mode BatchNorm into (scale, shift)."""
    s = gamma / jnp.sqrt(var + eps)
    return s, (conv_bias - mean) * s + beta


# ----------------------------------------------------------------------------
# Pallas kernel 1: fused matmul + per-channel scale/shift + optional ReLU
# (bf16 operands, fp32 accumulate) -- used for conv_block1 (1x1 conv)
# ----------------------------------------------------------------------------
def _mm_bn_act_kernel(x_ref, w_ref, scale_ref, shift_ref, o_ref, *, relu):
    acc = jnp.dot(x_ref[...], w_ref[...], preferred_element_type=jnp.float32)
    y = acc * scale_ref[...] + shift_ref[...]
    if relu:
        y = jnp.maximum(y, 0.0)
    o_ref[...] = y.astype(o_ref.dtype)


def fused_matmul(x, w, scale, shift, *, relu, out_dtype=jnp.float32, tm_max=512):
    """y = relu_opt((x @ w) * scale + shift).  x:[M,K], w:[K,N], scale/shift:[N]."""
    M, K = x.shape
    Kw, N = w.shape
    assert K == Kw, (x.shape, w.shape)
    tm = _pick_tile_m(M, tm_max)
    Mp = _round_up(M, tm)

    xb = x.astype(jnp.bfloat16)
    if Mp != M:
        xb = jnp.pad(xb, ((0, Mp - M), (0, 0)))
    wb = w.astype(jnp.bfloat16)
    scale2 = scale.reshape(1, N).astype(jnp.float32)
    shift2 = shift.reshape(1, N).astype(jnp.float32)

    out = pl.pallas_call(
        functools.partial(_mm_bn_act_kernel, relu=relu),
        out_shape=jax.ShapeDtypeStruct((Mp, N), out_dtype),
        grid_spec=pltpu.PrefetchScalarGridSpec(
            num_scalar_prefetch=0,
            grid=(Mp // tm,),
            in_specs=[
                pl.BlockSpec((tm, K), lambda i: (i, 0)),
                pl.BlockSpec((K, N), lambda i: (0, 0)),
                pl.BlockSpec((1, N), lambda i: (0, 0)),
                pl.BlockSpec((1, N), lambda i: (0, 0)),
            ],
            out_specs=pl.BlockSpec((tm, N), lambda i: (i, 0)),
        ),
        compiler_params=pltpu.CompilerParams(dimension_semantics=("parallel",)),
    )(xb, wb, scale2, shift2)
    return out[:M] if Mp != M else out


# ----------------------------------------------------------------------------
# Pallas kernel 2: DCNv2 offset/mask 3x3 conv, direct (no HBM im2col).
# Whole padded feature map for one image stays resident in VMEM; the 9 taps are
# accumulated in-kernel.  Weight columns are pre-permuted so the output channel
# order is [dy(9) | dx(9) | mask(9)]; sigmoid on the mask channels is fused in
# the epilogue (EUP, essentially free).
# ----------------------------------------------------------------------------
def _offset_conv_kernel(yp_ref, w_ref, b_ref, om_ref, *, Ho, Wo, mid):
    y_full = yp_ref[0]                                       # [Ho+2, Wo+2, mid] f32
    acc = jnp.zeros((Ho * Wo, 27), jnp.float32)
    for t in range(9):                                       # static unroll (3x3 taps)
        di, dj = divmod(t, 3)
        tap = y_full[di:di + Ho, dj:dj + Wo, :].reshape(Ho * Wo, mid)
        acc = acc + jnp.dot(tap.astype(jnp.bfloat16), w_ref[t],
                            preferred_element_type=jnp.float32)
    acc = acc + b_ref[...]
    lane = jax.lax.broadcasted_iota(jnp.int32, acc.shape, 1)
    out = jnp.where(lane >= 18, jax.nn.sigmoid(acc), acc)    # sigmoid on mask channels
    om_ref[...] = out.reshape(1, Ho, Wo, 27)


def offset_conv_3x3(y_up, w_taps, bias):
    """y_up:[N,Ho,Wo,mid] f32, w_taps:[9,mid,27], bias:[27] -> [N,Ho,Wo,27]."""
    N, Ho, Wo, mid = y_up.shape
    yp = jnp.pad(y_up, ((0, 0), (1, 1), (1, 1), (0, 0)))     # spatial pad 1 (zero)
    Hp, Wp = Ho + 2, Wo + 2
    bias2 = bias.reshape(1, 27).astype(jnp.float32)
    kernel = functools.partial(_offset_conv_kernel, Ho=Ho, Wo=Wo, mid=mid)
    # TODO(synk): for large Ho*Wo this needs row-tiling with a 1-row halo instead
    # of keeping the whole image resident in VMEM.
    return pl.pallas_call(
        kernel,
        out_shape=jax.ShapeDtypeStruct((N, Ho, Wo, 27), jnp.float32),
        grid_spec=pltpu.PrefetchScalarGridSpec(
            num_scalar_prefetch=0,
            grid=(N,),
            in_specs=[
                pl.BlockSpec((1, Hp, Wp, mid), lambda n: (n, 0, 0, 0)),
                pl.BlockSpec((9, mid, 27), lambda n: (0, 0, 0)),
                pl.BlockSpec((1, 27), lambda n: (0, 0)),
            ],
            out_specs=pl.BlockSpec((1, Ho, Wo, 27), lambda n: (n, 0, 0, 0)),
        ),
        compiler_params=pltpu.CompilerParams(dimension_semantics=("parallel",)),
    )(yp.astype(jnp.float32), w_taps.astype(jnp.bfloat16), bias2)


# ----------------------------------------------------------------------------
# Pallas kernel 3: fused [DCN weight-apply + BN + ReLU] -> [conv_block2 1x1 +
# BN + ReLU].  Intermediate never leaves the kernel (no HBM round-trip).
# ----------------------------------------------------------------------------
def _dcn_conv2_kernel(col_ref, wd_ref, s2_ref, b2_ref, w3_ref, s3_ref, b3_ref, o_ref):
    z = jnp.dot(col_ref[...], wd_ref[...], preferred_element_type=jnp.float32)
    z = jnp.maximum(z * s2_ref[...] + b2_ref[...], 0.0)
    out = jnp.dot(z.astype(jnp.bfloat16), w3_ref[...],
                  preferred_element_type=jnp.float32)
    out = jnp.maximum(out * s3_ref[...] + b3_ref[...], 0.0)
    o_ref[...] = out.astype(o_ref.dtype)


def dcn_conv2_fused(col, w_dcn, s2, b2, w3, s3, b3, *, out_dtype=jnp.float32,
                    tm_max=512):
    M, K1 = col.shape
    mid = w_dcn.shape[1]
    Cout = w3.shape[1]
    tm = _pick_tile_m(M, tm_max)
    Mp = _round_up(M, tm)

    colb = col.astype(jnp.bfloat16)
    if Mp != M:
        colb = jnp.pad(colb, ((0, Mp - M), (0, 0)))

    out = pl.pallas_call(
        _dcn_conv2_kernel,
        out_shape=jax.ShapeDtypeStruct((Mp, Cout), out_dtype),
        grid_spec=pltpu.PrefetchScalarGridSpec(
            num_scalar_prefetch=0,
            grid=(Mp // tm,),
            in_specs=[
                pl.BlockSpec((tm, K1), lambda i: (i, 0)),
                pl.BlockSpec((K1, mid), lambda i: (0, 0)),
                pl.BlockSpec((1, mid), lambda i: (0, 0)),
                pl.BlockSpec((1, mid), lambda i: (0, 0)),
                pl.BlockSpec((mid, Cout), lambda i: (0, 0)),
                pl.BlockSpec((1, Cout), lambda i: (0, 0)),
                pl.BlockSpec((1, Cout), lambda i: (0, 0)),
            ],
            out_specs=pl.BlockSpec((tm, Cout), lambda i: (i, 0)),
        ),
        compiler_params=pltpu.CompilerParams(dimension_semantics=("parallel",)),
    )(colb, w_dcn.astype(jnp.bfloat16),
      s2.reshape(1, -1).astype(jnp.float32), b2.reshape(1, -1).astype(jnp.float32),
      w3.astype(jnp.bfloat16),
      s3.reshape(1, -1).astype(jnp.float32), b3.reshape(1, -1).astype(jnp.float32))
    return out[:M] if Mp != M else out


# ----------------------------------------------------------------------------
# Plain-JAX glue (no gathers for the upsample; one fused gather for DCN sampling)
# ----------------------------------------------------------------------------
def _interp_matrix_align_corners(out_size, in_size):
    if in_size == 1:
        return jnp.ones((out_size, 1), jnp.float32)           # degenerate: replicate
    pos = jnp.arange(out_size, dtype=jnp.float32) * (in_size - 1) / max(out_size - 1, 1)
    i0 = jnp.clip(jnp.floor(pos), 0.0, float(in_size - 2))
    frac = pos - i0
    i0 = i0.astype(jnp.int32)
    rows = jnp.arange(out_size)
    m = jnp.zeros((out_size, in_size), jnp.float32)
    m = m.at[rows, i0].add(1.0 - frac)
    m = m.at[rows, i0 + 1].add(frac)
    return m


def upsample_bilinear_x2(y):
    """nn.Upsample(scale_factor=2, mode='bilinear', align_corners=True), NHWC,
    expressed as two small dense interpolation matmuls (gather-free)."""
    # TODO(synk): fusing this into the conv1 kernel epilogue needs spatial halo
    # tiling; kept as XLA einsums for now.
    N, H, W, C = y.shape
    Rh = _interp_matrix_align_corners(2 * H, H)
    Rw = _interp_matrix_align_corners(2 * W, W)
    y = jnp.einsum("ph,nhwc->npwc", Rh, y)
    y = jnp.einsum("qw,npwc->npqc", Rw, y)
    return y


def _deform_sample_cols(y, dy, dx, mask):
    """Modulated deformable 3x3 sampling (stride 1, pad 1, dilation 1), zero
    padding outside the image.  Returns columns [N*H*W, C*9] in (c_in, k) order
    to match PyTorch's weight.reshape(C_out, C_in*9)."""
    # TODO(synk): the data-dependent 2-D gather has no clean Pallas/TPU lowering;
    # kept as one fused XLA gather + weighted sum (mask folded into the corner
    # weights so no [N,H,W,9,C]-sized masked temporaries are materialized).
    N, H, W, C = y.shape
    ki = jnp.repeat(jnp.arange(3, dtype=jnp.float32), 3).reshape(1, 1, 1, 9)
    kj = jnp.tile(jnp.arange(3, dtype=jnp.float32), 3).reshape(1, 1, 1, 9)
    h_out = jnp.arange(H, dtype=jnp.float32).reshape(1, H, 1, 1)
    w_out = jnp.arange(W, dtype=jnp.float32).reshape(1, 1, W, 1)
    h = h_out + (ki - 1.0) + dy                               # [N,H,W,9]
    w = w_out + (kj - 1.0) + dx
    h0 = jnp.floor(h)
    w0 = jnp.floor(w)
    lh = h - h0
    lw = w - w0
    n_idx = jnp.arange(N).reshape(N, 1, 1, 1)

    def corner(hc, wc, wt):
        valid = (hc >= 0) & (hc <= H - 1) & (wc >= 0) & (wc <= W - 1)
        hi = jnp.clip(hc, 0, H - 1).astype(jnp.int32)
        wi = jnp.clip(wc, 0, W - 1).astype(jnp.int32)
        wgt = (wt * mask * valid.astype(y.dtype))[..., None]  # [N,H,W,9,1]
        return y[n_idx, hi, wi] * wgt                         # [N,H,W,9,C]

    col = (corner(h0, w0, (1.0 - lh) * (1.0 - lw))
           + corner(h0, w0 + 1.0, (1.0 - lh) * lw)
           + corner(h0 + 1.0, w0, lh * (1.0 - lw))
           + corner(h0 + 1.0, w0 + 1.0, lh * lw))
    return jnp.transpose(col, (0, 1, 2, 4, 3)).reshape(N * H * W, C * 9)


# ----------------------------------------------------------------------------
# Decoder block forward (NCHW in / NCHW out)
# ----------------------------------------------------------------------------
def decoder_block_forward(params, x1_nchw, x2_nchw=None):
    del x2_nchw  # x2 is unused by the reference forward
    x = jnp.transpose(x1_nchw, (0, 2, 3, 1)).astype(jnp.float32)   # NHWC
    N, H, W, Cin = x.shape
    mid = Cin // 4

    # ---- conv_block1: 1x1 conv + BN + ReLU (Pallas fused bf16 matmul) ----
    w1 = params["conv1_w"].reshape(mid, Cin).T
    s1, b1 = bn_fold(params["conv1_b"], params["bn1_g"], params["bn1_b"],
                     params["bn1_m"], params["bn1_v"])
    y = fused_matmul(x.reshape(N * H * W, Cin), w1, s1, b1, relu=True)
    y = y.reshape(N, H, W, mid)

    # ---- deconv_block: x2 bilinear upsample (align_corners=True) ----
    y = upsample_bilinear_x2(y)
    Ho, Wo = y.shape[1], y.shape[2]

    # ---- DCN offset/mask 3x3 conv: direct conv in a Pallas kernel ----
    # Output channels pre-permuted to [dy(9) | dx(9) | mask(9)]: this matches the
    # reference CUDA DCNv2 which reads cat(o1,o2) interleaved (offset[2k]=dy_k,
    # offset[2k+1]=dx_k) and sigmoids the last 9 channels.
    perm = jnp.asarray(list(range(0, 18, 2)) + list(range(1, 18, 2)) +
                       list(range(18, 27)))
    w_om = params["dcn_off_w"][perm]                           # [27, mid, 3, 3]
    b_om = params["dcn_off_b"][perm]
    w_taps = jnp.transpose(w_om, (2, 3, 1, 0)).reshape(9, mid, 27)
    om = offset_conv_3x3(y, w_taps, b_om)                      # [N,Ho,Wo,27]
    dy_o, dx_o, mask = om[..., :9], om[..., 9:18], om[..., 18:]

    # ---- modulated deformable sampling (XLA gather glue) ----
    col = _deform_sample_cols(y, dy_o, dx_o, mask)             # [M2, mid*9]

    # ---- fused: DCN weight + BN + ReLU  ->  conv_block2 (1x1) + BN + ReLU ----
    w_dcn = params["dcn_w"].reshape(mid, mid * 9).T            # (mid*9, mid)
    s2, b2 = bn_fold(params["dcn_b"], params["bn2_g"], params["bn2_b"],
                     params["bn2_m"], params["bn2_v"])
    Cout = params["conv2_w"].shape[0]
    w3 = params["conv2_w"].reshape(Cout, mid).T                # (mid, Cout)
    s3, b3 = bn_fold(params["conv2_b"], params["bn3_g"], params["bn3_b"],
                     params["bn3_m"], params["bn3_v"])
    out = dcn_conv2_fused(col, w_dcn, s2, b2, w3, s3, b3)      # [M2, Cout]
    out = out.reshape(N, Ho, Wo, Cout)
    return jnp.transpose(out, (0, 3, 1, 2))                    # back to NCHW


# ----------------------------------------------------------------------------
# Deterministic parameter construction + demo
# ----------------------------------------------------------------------------
def make_params(key, in_channels, out_channels):
    mid = in_channels // 4
    ks = jax.random.split(key, 20)
    nrm = jax.random.normal
    return {
        # conv_block1
        "conv1_w": 0.1 * nrm(ks[0], (mid, in_channels, 1, 1), jnp.float32),
        "conv1_b": 0.1 * nrm(ks[1], (mid,), jnp.float32),
        "bn1_g": 1.0 + 0.1 * nrm(ks[2], (mid,), jnp.float32),
        "bn1_b": 0.1 * nrm(ks[3], (mid,), jnp.float32),
        "bn1_m": 0.1 * nrm(ks[4], (mid,), jnp.float32),
        "bn1_v": 1.0 + 0.1 * jnp.abs(nrm(ks[5], (mid,), jnp.float32)),
        # DCN (deformable_groups=1, 3x3): offset/mask conv + main weight/bias
        "dcn_off_w": 0.05 * nrm(ks[6], (27, mid, 3, 3), jnp.float32),
        "dcn_off_b": 0.05 * nrm(ks[7], (27,), jnp.float32),
        "dcn_w": 0.1 * nrm(ks[8], (mid, mid, 3, 3), jnp.float32),
        "dcn_b": 0.1 * nrm(ks[9], (mid,), jnp.float32),
        "bn2_g": 1.0 + 0.1 * nrm(ks[10], (mid,), jnp.float32),
        "bn2_b": 0.1 * nrm(ks[11], (mid,), jnp.float32),
        "bn2_m": 0.1 * nrm(ks[12], (mid,), jnp.float32),
        "bn2_v": 1.0 + 0.1 * jnp.abs(nrm(ks[13], (mid,), jnp.float32)),
        # conv_block2
        "conv2_w": 0.1 * nrm(ks[14], (out_channels, mid, 1, 1), jnp.float32),
        "conv2_b": 0.1 * nrm(ks[15], (out_channels,), jnp.float32),
        "bn3_g": 1.0 + 0.1 * nrm(ks[16], (out_channels,), jnp.float32),
        "bn3_b": 0.1 * nrm(ks[17], (out_channels,), jnp.float32),
        "bn3_m": 0.1 * nrm(ks[18], (out_channels,), jnp.float32),
        "bn3_v": 1.0 + 0.1 * jnp.abs(nrm(ks[19], (out_channels,), jnp.float32)),
    }


if __name__ == "__main__":
    key = jax.random.PRNGKey(0)
    k_p, k_x1, k_x2 = jax.random.split(key, 3)

    in_channels, out_channels = 16, 8
    N, H, W = 2, 8, 8

    params = make_params(k_p, in_channels, out_channels)
    x1 = jax.random.normal(k_x1, (N, in_channels, H, W), jnp.float32)          # high-level
    x2 = jax.random.normal(k_x2, (N, in_channels, 2 * H, 2 * W), jnp.float32)  # unused

    out = decoder_block_forward(params, x1, x2)
    out = jax.block_until_ready(out)
    assert out.shape == (N, out_channels, 2 * H, 2 * W), out.shape
    assert bool(jnp.all(jnp.isfinite(out)))
    print("KERNEL_OK")
</pallas_src>

<mosaic_0001>
module attributes {stable_mosaic.version = 11 : i64} {
  func.func @_mm_bn_act_kernel(%arg0: i32, %arg1: memref<128x16xbf16, #tpu.memory_space<vmem>>, %arg2: memref<16x4xbf16, #tpu.memory_space<vmem>>, %arg3: memref<1x4xf32, #tpu.memory_space<vmem>>, %arg4: memref<1x4xf32, #tpu.memory_space<vmem>>, %arg5: memref<128x4xf32, #tpu.memory_space<vmem>>) attributes {dimension_semantics = [#tpu.dimension_semantics<parallel>], iteration_bounds = array<i64: 1>, scalar_prefetch = 0 : i64, scratch_operands = 0 : i64, tpu.core_type = #tpu.core_type<tc>, window_params = [{transform_indices = @transform_0, window_bounds = array<i64: 128, 16>}, {pipeline_mode = #tpu.pipeline_mode<synchronous>, transform_indices = @transform_1, window_bounds = array<i64: 16, 4>}, {pipeline_mode = #tpu.pipeline_mode<synchronous>, transform_indices = @transform_2, window_bounds = array<i64: 1, 4>}, {pipeline_mode = #tpu.pipeline_mode<synchronous>, transform_indices = @transform_3, window_bounds = array<i64: 1, 4>}, {transform_indices = @transform_4, window_bounds = array<i64: 128, 4>}]} {
    %c0 = arith.constant 0 : index
    %c0_0 = arith.constant 0 : index
    %0 = vector.load %arg1[%c0, %c0_0] : memref<128x16xbf16, #tpu.memory_space<vmem>>, vector<128x16xbf16>
    %c0_1 = arith.constant 0 : index
    %c0_2 = arith.constant 0 : index
    %1 = vector.load %arg2[%c0_1, %c0_2] : memref<16x4xbf16, #tpu.memory_space<vmem>>, vector<16x4xbf16>
    %cst = arith.constant dense<0.000000e+00> : vector<128x4xf32>
    %2 = tpu.matmul %0, %1, %cst {dimension_numbers = #tpu.dot_dimension_numbers<[1], [0], [0], [1], [0, 0, 1, 1], [], []>} : vector<128x16xbf16>, vector<16x4xbf16>, vector<128x4xf32> -> vector<128x4xf32>
    %c0_3 = arith.constant 0 : index
    %c0_4 = arith.constant 0 : index
    %3 = vector.load %arg3[%c0_3, %c0_4] : memref<1x4xf32, #tpu.memory_space<vmem>>, vector<1x4xf32>
    %4 = vector.broadcast %3 : vector<1x4xf32> to vector<128x4xf32>
    %5 = arith.mulf %2, %4 : vector<128x4xf32>
    %c0_5 = arith.constant 0 : index
    %c0_6 = arith.constant 0 : index
    %6 = vector.load %arg4[%c0_5, %c0_6] : memref<1x4xf32, #tpu.memory_space<vmem>>, vector<1x4xf32>
    %7 = vector.broadcast %6 : vector<1x4xf32> to vector<128x4xf32>
    %8 = arith.addf %5, %7 : vector<128x4xf32>
    %cst_7 = arith.constant 0.000000e+00 : f32
    %9 = vector.broadcast %cst_7 : f32 to vector<128x4xf32>
    %10 = arith.maximumf %8, %9 : vector<128x4xf32>
    %c0_8 = arith.constant 0 : index
    %c0_9 = arith.constant 0 : index
    %11 = vector.load %arg5[%c0_8, %c0_9] : memref<128x4xf32, #tpu.memory_space<vmem>>, vector<128x4xf32>
    tpu.vector_store %arg5[%c0_8, %c0_9], %10 {strides = array<i32>} : memref<128x4xf32, #tpu.memory_space<vmem>>, vector<128x4xf32>,
    return
  }
  func.func @transform_0(%arg0: i32) -> (i32, i32) {
    %c0_i32 = arith.constant 0 : i32
    %c0_i32_0 = arith.constant 0 : i32
    return %arg0, %c0_i32 : i32, i32
  }
  func.func @transform_1(%arg0: i32) -> (i32, i32) {
    %c0_i32 = arith.constant 0 : i32
    %c0_i32_0 = arith.constant 0 : i32
    %c0_i32_1 = arith.constant 0 : i32
    return %c0_i32, %c0_i32_0 : i32, i32
  }
  func.func @transform_2(%arg0: i32) -> (i32, i32) {
    %c0_i32 = arith.constant 0 : i32
    %c0_i32_0 = arith.constant 0 : i32
    %c0_i32_1 = arith.constant 0 : i32
    return %c0_i32, %c0_i32_0 : i32, i32
  }
  func.func @transform_3(%arg0: i32) -> (i32, i32) {
    %c0_i32 = arith.constant 0 : i32
    %c0_i32_0 = arith.constant 0 : i32
    %c0_i32_1 = arith.constant 0 : i32
    return %c0_i32, %c0_i32_0 : i32, i32
  }
  func.func @transform_4(%arg0: i32) -> (i32, i32) {
    %c0_i32 = arith.constant 0 : i32
    %c0_i32_0 = arith.constant 0 : i32
    return %arg0, %c0_i32 : i32, i32
  }
}

</mosaic_0001>

<llo_original>
// kernel: tpu_custom_call.1
$region0: #{tpu_custom_call.1}
  #allocation0 [shape = 'u32[]', space=smem, size = 0x4, offset = 0x4, fixed_abs, tag = 'smem constant byte address 0x4 - core index']
  #allocation1 [shape = 'u32[144,128]{1,0:T(1,128)}', space=vmem, size = 0x12000, scoped, tag = 'internal scratch']
  %s0 = inlined_call_operand.vmem [shape: bf16[128,16], index: 0, kind: input, shape index: {}]
  %s1 = inlined_call_operand.vmem [shape: bf16[16,4], index: 1, kind: input, shape index: {}]
  %s2 = inlined_call_operand.vmem [shape: f32[1,4], index: 2, kind: input, shape index: {}]
  %s3 = inlined_call_operand.vmem [shape: f32[1,4], index: 3, kind: input, shape index: {}]
  %s4 = inlined_call_operand.vmem [shape: f32[128,4], index: 4, kind: output, shape index: {}]
  %s5 = sld [smem:[#allocation0]]
  $region26: #{tpu_custom_call.1} parent=0
    _
  %s7 = ssub.s32 1, %s5
  %s8 = scalar_select 0, %s7, %s5
  // Predicated region
  $region2: #{tpu_custom_call.1} parent=0 // pred_check
    _
  $region3: #{tpu_custom_call.1} parent=0 // pred_check_branch
    %10 = sbr.rel (0) target = $region5
  $region4: #{tpu_custom_call.1} parent=0 // pred_region
    _
  $region5: #{tpu_custom_call.1} parent=0 // pred_fallthru
    _
  // Predicated region
  $region6: #{tpu_custom_call.1} parent=0 // pred_check
    _
  $region7: #{tpu_custom_call.1} parent=0 // pred_check_branch
    %12 = sbr.rel (0) target = $region9
  $region8: #{tpu_custom_call.1} parent=0 // pred_region
    _
  $region9: #{tpu_custom_call.1} parent=0 // pred_fallthru
    _
  // Predicated region
  $region10: #{tpu_custom_call.1} parent=0 // pred_check
    _
  $region11: #{tpu_custom_call.1} parent=0 // pred_check_branch
    %14 = sbr.rel (0) target = $region13
  $region12: #{tpu_custom_call.1} parent=0 // pred_region
    _
  $region13: #{tpu_custom_call.1} parent=0 // pred_fallthru
    _
  // Predicated region
  $region14: #{tpu_custom_call.1} parent=0 // pred_check
    _
  $region15: #{tpu_custom_call.1} parent=0 // pred_check_branch
    %16 = sbr.rel (0) target = $region17
  $region16: #{tpu_custom_call.1} parent=0 // pred_region
    _
  $region17: #{tpu_custom_call.1} parent=0 // pred_fallthru
    _
  %v18 = vld [vmem:[%s0] sm:$0xf]
  %v19 = vld [vmem:[%s0 + $0x4] sm:$0xf]
  %v20 = vld [vmem:[%s0 + $0x8] sm:$0xf]
  %v21 = vld [vmem:[%s0 + $0xc] sm:$0xf]
  %v22 = vld [vmem:[%s0 + $0x10] sm:$0xf]
  %v23 = vld [vmem:[%s0 + $0x14] sm:$0xf]
  %v24 = vld [vmem:[%s0 + $0x18] sm:$0xf]
  %v25 = vld [vmem:[%s0 + $0x1c] sm:$0xf]
  %v26 = vld [vmem:[%s0 + $0x20] sm:$0xf]
  %v27 = vld [vmem:[%s0 + $0x24] sm:$0xf]
  %v28 = vld [vmem:[%s0 + $0x28] sm:$0xf]
  %v29 = vld [vmem:[%s0 + $0x2c] sm:$0xf]
  %v30 = vld [vmem:[%s0 + $0x30] sm:$0xf]
  %v31 = vld [vmem:[%s0 + $0x34] sm:$0xf]
  %v32 = vld [vmem:[%s0 + $0x38] sm:$0xf]
  %v33 = vld [vmem:[%s0 + $0x3c] sm:$0xf]
  %v34 = vld [vmem:[%s1] sm:$0xf]
  %v35 = vld [vmem:[%s1 + $0x4] sm:$0xf]
  %v52 = vunpack.c.l.b16 %v18
  %v53 = vunpack.c.l.b16 %v19
  %v54 = vunpack.c.l.b16 %v20
  %v55 = vunpack.c.l.b16 %v21
  %v56 = vunpack.c.l.b16 %v22
  %v57 = vunpack.c.l.b16 %v23
  %v58 = vunpack.c.l.b16 %v24
  %v59 = vunpack.c.l.b16 %v25
  %v60 = vunpack.c.l.b16 %v26
  %v61 = vunpack.c.l.b16 %v27
  %v62 = vunpack.c.l.b16 %v28
  %v63 = vunpack.c.l.b16 %v29
  %v64 = vunpack.c.l.b16 %v30
  %v65 = vunpack.c.l.b16 %v31
  %v66 = vunpack.c.l.b16 %v32
  %v67 = vunpack.c.l.b16 %v33
  %v68 = vpack.c.b16 %v53, %v52
  %v69 = vpack.c.b16 %v55, %v54
  %v70 = vpack.c.b16 %v57, %v56
  %v71 = vpack.c.b16 %v59, %v58
  %v72 = vpack.c.b16 %v61, %v60
  %v73 = vpack.c.b16 %v63, %v62
  %v74 = vpack.c.b16 %v65, %v64
  %v75 = vpack.c.b16 %v67, %v66
  %v78 = vunpack.c.l.b16 %v34
  %v79 = vunpack.c.l.b16 %v35
  %v80 = vpack.c.b16 %v79, %v78
  %vm82 = vcmask 130048
  %v84 = vsel %vm82, %v68, 0
  %v87 = vsel %vm82, %v69, 0
  %v90 = vsel %vm82, %v70, 0
  %v93 = vsel %vm82, %v71, 0
  %v96 = vsel %vm82, %v72, 0
  %v99 = vsel %vm82, %v73, 0
  %v102 = vsel %vm82, %v74, 0
  %v105 = vsel %vm82, %v75, 0
  %107 = vmatprep.subr.bf16.mxu0 0
  %108 = vmatpush1.bf16.msra.mxu0 %v80
  %109 = vmatprep.subr.bf16.mxu0 0
  %110 = vmatpush1.bf16.msra.mxu0 0
  %111 = vmatprep.subr.bf16.mxu0 0
  %112 = vmatpush1.bf16.msra.mxu0 0
  %113 = vmatprep.subr.bf16.mxu0 0
  %114 = vmatpush1.bf16.msra.mxu0 0
  %115 = vmatprep.subr.bf16.mxu0 0
  %116 = vmatpush1.bf16.msra.mxu0 0
  %117 = vmatprep.subr.bf16.mxu0 0
  %118 = vmatpush1.bf16.msra.mxu0 0
  %119 = vmatprep.subr.bf16.mxu0 0
  %120 = vmatpush1.bf16.msra.mxu0 0
  %121 = vmatprep.subr.bf16.mxu0 0
  %122 = vmatpush1.bf16.msra.mxu0 0
  %123 = vmatprep.subr.bf16.mxu0 0
  %124 = vmatpush1.bf16.msra.mxu0 0
  %125 = vmatprep.subr.bf16.mxu0 0
  %126 = vmatpush1.bf16.msra.mxu0 0
  %127 = vmatprep.subr.bf16.mxu0 0
  %128 = vmatpush1.bf16.msra.mxu0 0
  %129 = vmatprep.subr.bf16.mxu0 0
  %130 = vmatpush1.bf16.msra.mxu0 0
  %131 = vmatprep.subr.bf16.mxu0 0
  %132 = vmatpush1.bf16.msra.mxu0 0
  %133 = vmatprep.subr.bf16.mxu0 0
  %134 = vmatpush1.bf16.msra.mxu0 0
  %135 = vmatprep.subr.bf16.mxu0 0
  %136 = vmatpush1.bf16.msra.mxu0 0
  %137 = vmatprep.subr.bf16.mxu0 0
  %138 = vmatpush1.bf16.msra.mxu0 0
  %139 = vmatprep.mubr.bf16.mxu0 0
  %140 = vmatmul.mubr.bf16.gmra.mrb[0].mxu0 %v84
  %v141 = vpop.f32.mrb[0].mxu0
  %v142 = vadd.f32 0.0, %v141
  %v143 = vpop.f32.mrb[0].mxu0
  %v144 = vpop.f32.mrb[0].mxu0
  %v145 = vadd.f32 0.0, %v144
  %v146 = vpop.f32.mrb[0].mxu0
  %147 = vmatprep.mubr.bf16.mxu0 0
  %148 = vmatmul.mubr.bf16.gmra.mrb[0].mxu0 %v87
  %v149 = vpop.f32.mrb[0].mxu0
  %v150 = vadd.f32 0.0, %v149
  %v151 = vpop.f32.mrb[0].mxu0
  %v152 = vpop.f32.mrb[0].mxu0
  %v153 = vadd.f32 0.0, %v152
  %v154 = vpop.f32.mrb[0].mxu0
  %155 = vmatprep.mubr.bf16.mxu0 0
  %156 = vmatmul.mubr.bf16.gmra.mrb[0].mxu0 %v90
  %v157 = vpop.f32.mrb[0].mxu0
  %v158 = vadd.f32 0.0, %v157
  %v159 = vpop.f32.mrb[0].mxu0
  %v160 = vpop.f32.mrb[0].mxu0
  %v161 = vadd.f32 0.0, %v160
  %v162 = vpop.f32.mrb[0].mxu0
  %163 = vmatprep.mubr.bf16.mxu0 0
  %164 = vmatmul.mubr.bf16.gmra.mrb[0].mxu0 %v93
  %v165 = vpop.f32.mrb[0].mxu0
  %v166 = vadd.f32 0.0, %v165
  %v167 = vpop.f32.mrb[0].mxu0
  %v168 = vpop.f32.mrb[0].mxu0
  %v169 = vadd.f32 0.0, %v168
  %v170 = vpop.f32.mrb[0].mxu0
  %171 = vmatprep.mubr.bf16.mxu0 0
  %172 = vmatmul.mubr.bf16.gmra.mrb[0].mxu0 %v96
  %v173 = vpop.f32.mrb[0].mxu0
  %v174 = vadd.f32 0.0, %v173
  %v175 = vpop.f32.mrb[0].mxu0
  %v176 = vpop.f32.mrb[0].mxu0
  %v177 = vadd.f32 0.0, %v176
  %v178 = vpop.f32.mrb[0].mxu0
  %179 = vmatprep.mubr.bf16.mxu0 0
  %180 = vmatmul.mubr.bf16.gmra.mrb[0].mxu0 %v99
  %v181 = vpop.f32.mrb[0].mxu0
  %v182 = vadd.f32 0.0, %v181
  %v183 = vpop.f32.mrb[0].mxu0
  %v184 = vpop.f32.mrb[0].mxu0
  %v185 = vadd.f32 0.0, %v184
  %v186 = vpop.f32.mrb[0].mxu0
  %187 = vmatprep.mubr.bf16.mxu0 0
  %188 = vmatmul.mubr.bf16.gmra.mrb[0].mxu0 %v102
  %v189 = vpop.f32.mrb[0].mxu0
  %v190 = vadd.f32 0.0, %v189
  %v191 = vpop.f32.mrb[0].mxu0
  %v192 = vpop.f32.mrb[0].mxu0
  %v193 = vadd.f32 0.0, %v192
  %v194 = vpop.f32.mrb[0].mxu0
  %195 = vmatprep.mubr.bf16.mxu0 0
  %196 = vmatmul.mubr.bf16.gmra.mrb[0].mxu0 %v105
  %v197 = vpop.f32.mrb[0].mxu0
  %v198 = vadd.f32 0.0, %v197
  %v199 = vpop.f32.mrb[0].mxu0
  %v200 = vpop.f32.mrb[0].mxu0
  %v201 = vadd.f32 0.0, %v200
  %v202 = vpop.f32.mrb[0].mxu0
  %203 = vdwg.mxu0
  %v204 = vld [vmem:[%s2] sm:$0x1]
  %v206 = vlaneseq
  %v207 = vshrl.u32 %v206, 7
  %v208 = vsub.s32 0, %v207
  %v209 = vrot.slane %v204, %v208
  %v211 = vmul.f32 %v142, %v209
  %v212 = vmul.f32 %v145, %v209
  %v213 = vmul.f32 %v150, %v209
  %v214 = vmul.f32 %v153, %v209
  %v215 = vmul.f32 %v158, %v209
  %v216 = vmul.f32 %v161, %v209
  %v217 = vmul.f32 %v166, %v209
  %v218 = vmul.f32 %v169, %v209
  %v219 = vmul.f32 %v174, %v209
  %v220 = vmul.f32 %v177, %v209
  %v221 = vmul.f32 %v182, %v209
  %v222 = vmul.f32 %v185, %v209
  %v223 = vmul.f32 %v190, %v209
  %v224 = vmul.f32 %v193, %v209
  %v225 = vmul.f32 %v198, %v209
  %v226 = vmul.f32 %v201, %v209
  %v227 = vld [vmem:[%s3] sm:$0x1]
  %v229 = vlaneseq
  %v230 = vshrl.u32 %v229, 7
  %v231 = vsub.s32 0, %v230
  %v232 = vrot.slane %v227, %v231
  %v234 = vadd.f32 %v211, %v232
  %v235 = vadd.f32 %v212, %v232
  %v236 = vadd.f32 %v213, %v232
  %v237 = vadd.f32 %v214, %v232
  %v238 = vadd.f32 %v215, %v232
  %v239 = vadd.f32 %v216, %v232
  %v240 = vadd.f32 %v217, %v232
  %v241 = vadd.f32 %v218, %v232
  %v242 = vadd.f32 %v219, %v232
  %v243 = vadd.f32 %v220, %v232
  %v244 = vadd.f32 %v221, %v232
  %v245 = vadd.f32 %v222, %v232
  %v246 = vadd.f32 %v223, %v232
  %v247 = vadd.f32 %v224, %v232
  %v248 = vadd.f32 %v225, %v232
  %v249 = vadd.f32 %v226, %v232
  %v250 = vmax.f32 %v234, 0.0
  %v251 = vmax.f32 %v235, 0.0
  %v252 = vmax.f32 %v236, 0.0
  %v253 = vmax.f32 %v237, 0.0
  %v254 = vmax.f32 %v238, 0.0
  %v255 = vmax.f32 %v239, 0.0
  %v256 = vmax.f32 %v240, 0.0
  %v257 = vmax.f32 %v241, 0.0
  %v258 = vmax.f32 %v242, 0.0
  %v259 = vmax.f32 %v243, 0.0
  %v260 = vmax.f32 %v244, 0.0
  %v261 = vmax.f32 %v245, 0.0
  %v262 = vmax.f32 %v246, 0.0
  %v263 = vmax.f32 %v247, 0.0
  %v264 = vmax.f32 %v248, 0.0
  %v265 = vmax.f32 %v249, 0.0
  %vm266 = vcmask 31744
  %267 = vst.msk [vmem:[%s4] sm:$0xff] %vm266, %v250
  %268 = vst.msk [vmem:[%s4 + $0x8] sm:$0xff] %vm266, %v251
  %269 = vst.msk [vmem:[%s4 + $0x10] sm:$0xff] %vm266, %v252
  %270 = vst.msk [vmem:[%s4 + $0x18] sm:$0xff] %vm266, %v253
  %271 = vst.msk [vmem:[%s4 + $0x20] sm:$0xff] %vm266, %v254
  %272 = vst.msk [vmem:[%s4 + $0x28] sm:$0xff] %vm266, %v255
  %273 = vst.msk [vmem:[%s4 + $0x30] sm:$0xff] %vm266, %v256
  %274 = vst.msk [vmem:[%s4 + $0x38] sm:$0xff] %vm266, %v257
  %275 = vst.msk [vmem:[%s4 + $0x40] sm:$0xff] %vm266, %v258
  %276 = vst.msk [vmem:[%s4 + $0x48] sm:$0xff] %vm266, %v259
  %277 = vst.msk [vmem:[%s4 + $0x50] sm:$0xff] %vm266, %v260
  %278 = vst.msk [vmem:[%s4 + $0x58] sm:$0xff] %vm266, %v261
  %279 = vst.msk [vmem:[%s4 + $0x60] sm:$0xff] %vm266, %v262
  %280 = vst.msk [vmem:[%s4 + $0x68] sm:$0xff] %vm266, %v263
  %281 = vst.msk [vmem:[%s4 + $0x70] sm:$0xff] %vm266, %v264
  %282 = vst.msk [vmem:[%s4 + $0x78] sm:$0xff] %vm266, %v265
  // Predicated region
  $region18: #{tpu_custom_call.1} parent=0 // pred_check
    _
  $region19: #{tpu_custom_call.1} parent=0 // pred_check_branch
    %284 = sbr.rel (0) target = $region21
  $region20: #{tpu_custom_call.1} parent=0 // pred_region
    _
  $region21: #{tpu_custom_call.1} parent=0 // pred_fallthru
    _
  // Predicated region
  $region22: #{tpu_custom_call.1} parent=0 // pred_check
    _
  $region23: #{tpu_custom_call.1} parent=0 // pred_check_branch
    %286 = sbr.rel (0) target = $region25
  $region24: #{tpu_custom_call.1} parent=0 // pred_region
    _
  $region25: #{tpu_custom_call.1} parent=0 // pred_fallthru
    _

</llo_original>
